<compile_context>
chip_gen: v5e
topology: v5e:2x2
jax: 0.10.0
libtpu: 0.0.40
codegen_flags: <defaults>
</compile_context>

<pallas_src>
import functools

import jax
import jax.numpy as jnp
from jax import lax
from jax.experimental import pallas as pl
from jax.experimental.pallas import tpu as pltpu


_INV_SQRT2 = 0.7071067811865476
_LN_EPS = 1e-5


# ----------------------------- MLM head kernel -----------------------------

def _mlm_kernel(x_ref, w1_ref, b1_ref, g_ref, beta_ref, w2_ref, b2_ref,
                out_ref, hn_ref):
    # hn_ref: persistent VMEM scratch (tm, H) bf16, reused across the inner
    # vocab axis j.  Recompute only when a new row tile starts (j == 0).
    # Correctness requires j to run sequentially ("arbitrary") with j==0 first.
    @pl.when(pl.program_id(1) == 0)
    def _():
        # Linear(hidden, hidden): bf16 operands on the MXU, f32 accumulation.
        h = jnp.dot(x_ref[...], w1_ref[...],
                    preferred_element_type=jnp.float32) + b1_ref[...]
        # Exact (erf) GELU — matches PyTorch nn.GELU default.
        h = 0.5 * h * (1.0 + lax.erf(h * _INV_SQRT2))
        # LayerNorm over hidden dim: biased variance, eps=1e-5, f32 stats.
        mu = jnp.mean(h, axis=-1, keepdims=True)
        var = jnp.mean((h - mu) * (h - mu), axis=-1, keepdims=True)
        hn = (h - mu) * lax.rsqrt(var + _LN_EPS)
        hn = hn * g_ref[...] + beta_ref[...]
        hn_ref[...] = hn.astype(hn_ref.dtype)

    # Linear(hidden, vocab) on the current vocab tile: bf16 MXU, f32 accumulate.
    y = jnp.dot(hn_ref[...], w2_ref[...],
                preferred_element_type=jnp.float32) + b2_ref[...]
    out_ref[...] = y.astype(out_ref.dtype)


# --------------------------- tiling / chip planning -------------------------

def _round_up(x, m):
    return ((x + m - 1) // m) * m


def _vmem_capacity_bytes():
    # Trace-time hardware query; fall back to the smallest per-core VMEM
    # (v7x: 64 MiB) so tile choices stay conservative if the query fails.
    try:
        return int(pltpu.get_tpu_info().vmem_capacity_bytes)
    except Exception:
        return 64 * 1024 * 1024


def _tile_plan(M, V, tm, tn):
    """Generation-aware tile sizes and VMEM limit."""
    vmem = _vmem_capacity_bytes()
    if vmem >= 100 * 1024 * 1024:            # v5e / v6e: 128 MiB VMEM
        tm_max, tn_max, vmem_limit = 1024, 2048, 100 * 1024 * 1024
    else:                                    # v7x: 64 MiB VMEM per TensorCore
        tm_max, tn_max, vmem_limit = 512, 1024, 48 * 1024 * 1024
    if tm is None:
        # Keep >= 2 row tiles when possible so the "parallel" row axis can be
        # split across v7x's two TensorCores; multiple of 16 for bf16 sublanes.
        tm = min(tm_max, _round_up(max(pl.cdiv(M, 2), 16), 16))
    if tn is None:
        # Multiple of 128 -> lane-dense, unmasked output stores.
        tn = min(tn_max, _round_up(V, 128))
    return tm, tn, vmem_limit


def _resident_spec(shape, index_map):
    # Grid-invariant operand (constant index map): fetched once; single-buffer
    # it when supported (pure VMEM savings — W1's 2nd buffer ~1 MiB at H=768).
    try:
        return pl.BlockSpec(shape, index_map, pipeline_mode=pl.Buffered(1))
    except (AttributeError, TypeError):
        return pl.BlockSpec(shape, index_map)


# ------------------------------- MLM head call -------------------------------

def mlm_head(x2d, w1, b1, gamma, beta, w2, b2, *, tm=None, tn=None,
             logits_dtype=None):
    M, H = x2d.shape
    V = w2.shape[1]
    out_dtype = jnp.dtype(logits_dtype or x2d.dtype)

    tm, tn, vmem_limit = _tile_plan(M, V, tm, tn)

    # Pad rows to a multiple of tm and vocab to a multiple of tn; trim after.
    Mp = pl.cdiv(M, tm) * tm
    Vp = pl.cdiv(V, tn) * tn
    if Mp != M:
        x2d = jnp.pad(x2d, ((0, Mp - M), (0, 0)))
    if Vp != V:
        w2 = jnp.pad(w2, ((0, 0), (0, Vp - V)))
        b2 = jnp.pad(b2, ((0, 0), (0, Vp - V)))

    # bf16 operands for both matmuls (f32 accumulation in-kernel).  Casting x
    # here (not in the kernel) halves its DMA + double-buffer footprint.
    x2d = x2d.astype(jnp.bfloat16)
    w1 = w1.astype(jnp.bfloat16)
    w2 = w2.astype(jnp.bfloat16)

    n_row_tiles = Mp // tm
    n_vocab_tiles = Vp // tn
    out_itemsize = out_dtype.itemsize

    # Honest HBM traffic: W2/b2 are re-streamed once per row tile.
    cost = pl.CostEstimate(
        flops=2 * Mp * H * (H + Vp),
        transcendentals=Mp * H,
        bytes_accessed=(
            Mp * H * 2                          # x (bf16), streamed once
            + H * H * 2 + 3 * H * 4             # W1 (bf16) + b1/gamma/beta, once
            + n_row_tiles * (H * Vp * 2)        # W2 (bf16), once per row tile
            + n_row_tiles * (Vp * 4)            # b2 (f32), once per row tile
            + Mp * Vp * out_itemsize            # logits write
        ),
    )

    out = pl.pallas_call(
        _mlm_kernel,
        out_shape=jax.ShapeDtypeStruct((Mp, Vp), out_dtype),
        grid_spec=pltpu.PrefetchScalarGridSpec(
            num_scalar_prefetch=0,
            grid=(n_row_tiles, n_vocab_tiles),
            in_specs=[
                pl.BlockSpec((tm, H), lambda i, j: (i, 0)),     # x row tile
                _resident_spec((H, H), lambda i, j: (0, 0)),    # W1 (resident)
                _resident_spec((1, H), lambda i, j: (0, 0)),    # b1
                _resident_spec((1, H), lambda i, j: (0, 0)),    # LN gamma
                _resident_spec((1, H), lambda i, j: (0, 0)),    # LN beta
                pl.BlockSpec((H, tn), lambda i, j: (0, j)),     # W2 vocab tile
                pl.BlockSpec((1, tn), lambda i, j: (0, j)),     # b2 vocab tile
            ],
            out_specs=pl.BlockSpec((tm, tn), lambda i, j: (i, j)),
            scratch_shapes=[pltpu.VMEM((tm, H), jnp.bfloat16)],  # cached hn
        ),
        compiler_params=pltpu.CompilerParams(
            # Row tiles are independent -> "parallel" (split across v7x's two
            # TCs).  The vocab axis MUST stay sequential ("arbitrary"): the hn
            # scratch is computed once per row tile under pl.when(j == 0).
            dimension_semantics=("parallel", "arbitrary"),
            vmem_limit_bytes=vmem_limit,
        ),
        cost_estimate=cost,
    )(x2d, w1, b1, gamma, beta, w2, b2)

    return out[:M, :V]


# -------------------------------- full module --------------------------------

@functools.partial(jax.jit, static_argnames=("tm", "tn", "logits_dtype"))
def bert_pretraining_head(encoded, params, *, tm=None, tn=None,
                          logits_dtype=None):
    B, S, H = encoded.shape
    x2d = encoded.reshape(B * S, H)
    mlm2d = mlm_head(x2d, params["w1"], params["b1"], params["gamma"],
                     params["beta"], params["w2"], params["b2"],
                     tm=tm, tn=tn, logits_dtype=logits_dtype)
    mlm_logits = mlm2d.reshape(B, S, -1)

    # NSP head: a 2-wide output is pure overhead as a Pallas kernel — let XLA
    # fuse the (H, 2) matmul.
    cls_rep = encoded[:, 0, :]
    nsp_logits = cls_rep @ params["wn"] + params["bn"][0]
    return mlm_logits, nsp_logits


def init_params(key, hidden_size, vocab_size):
    ks = jax.random.split(key, 6)
    scale = 0.02
    return {
        "w1":    jax.random.normal(ks[0], (hidden_size, hidden_size), jnp.float32) * scale,
        "b1":    jax.random.normal(ks[1], (1, hidden_size), jnp.float32) * scale,
        "gamma": jnp.ones((1, hidden_size), jnp.float32),
        "beta":  jnp.zeros((1, hidden_size), jnp.float32),
        "w2":    jax.random.normal(ks[2], (hidden_size, vocab_size), jnp.float32) * scale,
        "b2":    jax.random.normal(ks[3], (1, vocab_size), jnp.float32) * scale,
        "wn":    jax.random.normal(ks[4], (hidden_size, 2), jnp.float32) * scale,
        "bn":    jax.random.normal(ks[5], (1, 2), jnp.float32) * scale,
    }


def _reference(encoded, p):
    h = encoded @ p["w1"] + p["b1"][0]
    h = 0.5 * h * (1.0 + lax.erf(h / jnp.sqrt(2.0)))
    mu = jnp.mean(h, axis=-1, keepdims=True)
    var = jnp.mean((h - mu) ** 2, axis=-1, keepdims=True)
    hn = (h - mu) * lax.rsqrt(var + _LN_EPS) * p["gamma"][0] + p["beta"][0]
    mlm = hn @ p["w2"] + p["b2"][0]
    nsp = encoded[:, 0, :] @ p["wn"] + p["bn"][0]
    return mlm, nsp


if __name__ == "__main__":
    B, S, H, V = 2, 8, 32, 64
    key = jax.random.PRNGKey(0)
    k_x, k_p = jax.random.split(key)

    encoded = jax.random.normal(k_x, (B, S, H), jnp.float32)
    params = init_params(k_p, H, V)

    # Auto tiling: at these tiny shapes the planner picks tm=16 (M=16 rows)
    # and tn=128 (V=64 padded to one lane-dense vocab tile).  At BERT-base
    # shapes it picks tm=512/tn=1024 on v7x and tm=1024/tn=2048 on v5e/v6e.
    mlm_logits, nsp_logits = bert_pretraining_head(encoded, params)
    jax.block_until_ready((mlm_logits, nsp_logits))

    # Sanity check vs. pure-JAX f32 reference (bf16 matmuls -> loose tolerance).
    mlm_ref, nsp_ref = _reference(encoded, params)
    assert mlm_logits.shape == (B, S, V) and nsp_logits.shape == (B, 2)
    assert jnp.allclose(mlm_logits, mlm_ref, atol=2e-2, rtol=2e-2)
    assert jnp.allclose(nsp_logits, nsp_ref, atol=2e-2, rtol=2e-2)

    print("KERNEL_OK")
</pallas_src>

<mosaic_0001>
module attributes {stable_mosaic.version = 11 : i64} {
  func.func @_mlm_kernel(%arg0: i32, %arg1: i32, %arg2: memref<16x32xbf16, #tpu.memory_space<vmem>>, %arg3: memref<32x32xbf16, #tpu.memory_space<vmem>>, %arg4: memref<1x32xf32, #tpu.memory_space<vmem>>, %arg5: memref<1x32xf32, #tpu.memory_space<vmem>>, %arg6: memref<1x32xf32, #tpu.memory_space<vmem>>, %arg7: memref<32x128xbf16, #tpu.memory_space<vmem>>, %arg8: memref<1x128xf32, #tpu.memory_space<vmem>>, %arg9: memref<16x128xf32, #tpu.memory_space<vmem>>, %arg10: memref<16x32xbf16, #tpu.memory_space<vmem>>) attributes {dimension_semantics = [#tpu.dimension_semantics<parallel>, #tpu.dimension_semantics<arbitrary>], iteration_bounds = array<i64: 1, 1>, scalar_prefetch = 0 : i64, scratch_operands = 1 : i64, tpu.core_type = #tpu.core_type<tc>, window_params = [{transform_indices = @transform_0, window_bounds = array<i64: 16, 32>}, {pipeline_mode = #tpu.pipeline_mode<synchronous>, transform_indices = @transform_1, window_bounds = array<i64: 32, 32>}, {pipeline_mode = #tpu.pipeline_mode<synchronous>, transform_indices = @transform_2, window_bounds = array<i64: 1, 32>}, {pipeline_mode = #tpu.pipeline_mode<synchronous>, transform_indices = @transform_3, window_bounds = array<i64: 1, 32>}, {pipeline_mode = #tpu.pipeline_mode<synchronous>, transform_indices = @transform_4, window_bounds = array<i64: 1, 32>}, {transform_indices = @transform_5, window_bounds = array<i64: 32, 128>}, {transform_indices = @transform_6, window_bounds = array<i64: 1, 128>}, {transform_indices = @transform_7, window_bounds = array<i64: 16, 128>}]} {
    %c0_i32 = arith.constant 0 : i32
    %0 = arith.cmpi eq, %arg1, %c0_i32 : i32
    %1 = arith.extui %0 : i1 to i32
    %c0_i32_0 = arith.constant 0 : i32
    %2 = arith.cmpi ne, %1, %c0_i32_0 : i32
    scf.if %2 {
      %c0_8 = arith.constant 0 : index
      %c0_9 = arith.constant 0 : index
      %10 = vector.load %arg2[%c0_8, %c0_9] : memref<16x32xbf16, #tpu.memory_space<vmem>>, vector<16x32xbf16>
      %c0_10 = arith.constant 0 : index
      %c0_11 = arith.constant 0 : index
      %11 = vector.load %arg3[%c0_10, %c0_11] : memref<32x32xbf16, #tpu.memory_space<vmem>>, vector<32x32xbf16>
      %cst_12 = arith.constant dense<0.000000e+00> : vector<16x32xf32>
      %12 = tpu.matmul %10, %11, %cst_12 {dimension_numbers = #tpu.dot_dimension_numbers<[1], [0], [0], [1], [0, 0, 1, 1], [], []>} : vector<16x32xbf16>, vector<32x32xbf16>, vector<16x32xf32> -> vector<16x32xf32>
      %c0_13 = arith.constant 0 : index
      %c0_14 = arith.constant 0 : index
      %13 = vector.load %arg4[%c0_13, %c0_14] : memref<1x32xf32, #tpu.memory_space<vmem>>, vector<1x32xf32>
      %14 = vector.broadcast %13 : vector<1x32xf32> to vector<16x32xf32>
      %15 = arith.addf %12, %14 : vector<16x32xf32>
      %cst_15 = arith.constant 5.000000e-01 : f32
      %16 = vector.broadcast %cst_15 : f32 to vector<16x32xf32>
      %17 = arith.mulf %16, %15 : vector<16x32xf32>
      %cst_16 = arith.constant 0.707106769 : f32
      %18 = vector.broadcast %cst_16 : f32 to vector<16x32xf32>
      %19 = arith.mulf %15, %18 : vector<16x32xf32>
      %20 = math.erf %19 : vector<16x32xf32>
      %cst_17 = arith.constant 1.000000e+00 : f32
      %21 = vector.broadcast %cst_17 : f32 to vector<16x32xf32>
      %22 = arith.addf %21, %20 : vector<16x32xf32>
      %23 = arith.mulf %17, %22 : vector<16x32xf32>
      %cst_18 = arith.constant dense<0.000000e+00> : vector<16xf32>
      %24 = vector.multi_reduction <add>, %23, %cst_18 [1] : vector<16x32xf32> to vector<16xf32>
      %25 = vector.shape_cast %24 : vector<16xf32> to vector<16x1xf32>
      %cst_19 = arith.constant 3.200000e+01 : f32
      %26 = vector.broadcast %cst_19 : f32 to vector<16x1xf32>
      %27 = arith.divf %25, %26 : vector<16x1xf32>
      %28 = vector.broadcast %27 : vector<16x1xf32> to vector<16x32xf32>
      %29 = arith.subf %23, %28 : vector<16x32xf32>
      %30 = vector.broadcast %27 : vector<16x1xf32> to vector<16x32xf32>
      %31 = arith.subf %23, %30 : vector<16x32xf32>
      %32 = arith.mulf %29, %31 : vector<16x32xf32>
      %cst_20 = arith.constant dense<0.000000e+00> : vector<16xf32>
      %33 = vector.multi_reduction <add>, %32, %cst_20 [1] : vector<16x32xf32> to vector<16xf32>
      %34 = vector.shape_cast %33 : vector<16xf32> to vector<16x1xf32>
      %cst_21 = arith.constant 3.200000e+01 : f32
      %35 = vector.broadcast %cst_21 : f32 to vector<16x1xf32>
      %36 = arith.divf %34, %35 : vector<16x1xf32>
      %37 = vector.broadcast %27 : vector<16x1xf32> to vector<16x32xf32>
      %38 = arith.subf %23, %37 : vector<16x32xf32>
      %cst_22 = arith.constant 9.99999974E-6 : f32
      %39 = vector.broadcast %cst_22 : f32 to vector<16x1xf32>
      %40 = arith.addf %36, %39 : vector<16x1xf32>
      %41 = math.rsqrt %40 : vector<16x1xf32>
      %42 = vector.broadcast %41 : vector<16x1xf32> to vector<16x32xf32>
      %43 = arith.mulf %38, %42 : vector<16x32xf32>
      %c0_23 = arith.constant 0 : index
      %c0_24 = arith.constant 0 : index
      %44 = vector.load %arg5[%c0_23, %c0_24] : memref<1x32xf32, #tpu.memory_space<vmem>>, vector<1x32xf32>
      %45 = vector.broadcast %44 : vector<1x32xf32> to vector<16x32xf32>
      %46 = arith.mulf %43, %45 : vector<16x32xf32>
      %c0_25 = arith.constant 0 : index
      %c0_26 = arith.constant 0 : index
      %47 = vector.load %arg6[%c0_25, %c0_26] : memref<1x32xf32, #tpu.memory_space<vmem>>, vector<1x32xf32>
      %48 = vector.broadcast %47 : vector<1x32xf32> to vector<16x32xf32>
      %49 = arith.addf %46, %48 : vector<16x32xf32>
      %50 = arith.truncf %49 : vector<16x32xf32> to vector<16x32xbf16>
      %c0_27 = arith.constant 0 : index
      %c0_28 = arith.constant 0 : index
      %51 = vector.load %arg10[%c0_27, %c0_28] : memref<16x32xbf16, #tpu.memory_space<vmem>>, vector<16x32xbf16>
      tpu.vector_store %arg10[%c0_27, %c0_28], %50 {strides = array<i32>} : memref<16x32xbf16, #tpu.memory_space<vmem>>, vector<16x32xbf16>,
    } else {
    }
    %c0 = arith.constant 0 : index
    %c0_1 = arith.constant 0 : index
    %3 = vector.load %arg10[%c0, %c0_1] : memref<16x32xbf16, #tpu.memory_space<vmem>>, vector<16x32xbf16>
    %c0_2 = arith.constant 0 : index
    %c0_3 = arith.constant 0 : index
    %4 = vector.load %arg7[%c0_2, %c0_3] : memref<32x128xbf16, #tpu.memory_space<vmem>>, vector<32x128xbf16>
    %cst = arith.constant dense<0.000000e+00> : vector<16x128xf32>
    %5 = tpu.matmul %3, %4, %cst {dimension_numbers = #tpu.dot_dimension_numbers<[1], [0], [0], [1], [0, 0, 1, 1], [], []>} : vector<16x32xbf16>, vector<32x128xbf16>, vector<16x128xf32> -> vector<16x128xf32>
    %c0_4 = arith.constant 0 : index
    %c0_5 = arith.constant 0 : index
    %6 = vector.load %arg8[%c0_4, %c0_5] : memref<1x128xf32, #tpu.memory_space<vmem>>, vector<1x128xf32>
    %7 = vector.broadcast %6 : vector<1x128xf32> to vector<16x128xf32>
    %8 = arith.addf %5, %7 : vector<16x128xf32>
    %c0_6 = arith.constant 0 : index
    %c0_7 = arith.constant 0 : index
    %9 = vector.load %arg9[%c0_6, %c0_7] : memref<16x128xf32, #tpu.memory_space<vmem>>, vector<16x128xf32>
    tpu.vector_store %arg9[%c0_6, %c0_7], %8 {strides = array<i32>} : memref<16x128xf32, #tpu.memory_space<vmem>>, vector<16x128xf32>,
    return
  }
  func.func @transform_0(%arg0: i32, %arg1: i32) -> (i32, i32) {
    %c0_i32 = arith.constant 0 : i32
    %c0_i32_0 = arith.constant 0 : i32
    return %arg0, %c0_i32 : i32, i32
  }
  func.func @transform_1(%arg0: i32, %arg1: i32) -> (i32, i32) {
    %c0_i32 = arith.constant 0 : i32
    %c0_i32_0 = arith.constant 0 : i32
    %c0_i32_1 = arith.constant 0 : i32
    return %c0_i32, %c0_i32_0 : i32, i32
  }
  func.func @transform_2(%arg0: i32, %arg1: i32) -> (i32, i32) {
    %c0_i32 = arith.constant 0 : i32
    %c0_i32_0 = arith.constant 0 : i32
    %c0_i32_1 = arith.constant 0 : i32
    return %c0_i32, %c0_i32_0 : i32, i32
  }
  func.func @transform_3(%arg0: i32, %arg1: i32) -> (i32, i32) {
    %c0_i32 = arith.constant 0 : i32
    %c0_i32_0 = arith.constant 0 : i32
    %c0_i32_1 = arith.constant 0 : i32
    return %c0_i32, %c0_i32_0 : i32, i32
  }
  func.func @transform_4(%arg0: i32, %arg1: i32) -> (i32, i32) {
    %c0_i32 = arith.constant 0 : i32
    %c0_i32_0 = arith.constant 0 : i32
    %c0_i32_1 = arith.constant 0 : i32
    return %c0_i32, %c0_i32_0 : i32, i32
  }
  func.func @transform_5(%arg0: i32, %arg1: i32) -> (i32, i32) {
    %c0_i32 = arith.constant 0 : i32
    %c0_i32_0 = arith.constant 0 : i32
    return %c0_i32, %arg1 : i32, i32
  }
  func.func @transform_6(%arg0: i32, %arg1: i32) -> (i32, i32) {
    %c0_i32 = arith.constant 0 : i32
    %c0_i32_0 = arith.constant 0 : i32
    return %c0_i32, %arg1 : i32, i32
  }
  func.func @transform_7(%arg0: i32, %arg1: i32) -> (i32, i32) {
    %c0_i32 = arith.constant 0 : i32
    return %arg0, %arg1 : i32, i32
  }
}

</mosaic_0001>

<llo_original>
// kernel: bert_pretraining_head.1
$region0: #{bert_pretraining_head.1}
  #allocation0 [shape = 'u32[]', space=smem, size = 0x4, offset = 0x4, fixed_abs, tag = 'smem constant byte address 0x4 - core index']
  #allocation1 [shape = 'u32[72,128]{1,0:T(1,128)}', space=vmem, size = 0x9000, scoped, tag = 'internal scratch']
  #allocation2 [shape = 'bf16[16,32]{1,0:T(8,128)(2,1)}', space=vmem, size = 0x1000, scoped, tag = 'scratch operand']
  %s0 = inlined_call_operand.vmem [shape: bf16[16,32], index: 0, kind: input, shape index: {}]
  %s1 = inlined_call_operand.vmem [shape: bf16[32,32], index: 1, kind: input, shape index: {}]
  %s2 = inlined_call_operand.vmem [shape: f32[1,32], index: 2, kind: input, shape index: {}]
  %s3 = inlined_call_operand.vmem [shape: f32[1,32], index: 3, kind: input, shape index: {}]
  %s4 = inlined_call_operand.vmem [shape: f32[1,32], index: 4, kind: input, shape index: {}]
  %s5 = inlined_call_operand.vmem [shape: bf16[32,128], index: 5, kind: input, shape index: {}]
  %s6 = inlined_call_operand.vmem [shape: f32[1,128], index: 6, kind: input, shape index: {}]
  %s7 = inlined_call_operand.vmem [shape: f32[16,128], index: 7, kind: output, shape index: {}]
  %s8 = sld [smem:[#allocation0]]
  $region42: #{bert_pretraining_head.1} parent=0
    _
  %s10 = ssub.s32 1, %s8
  %s11 = scalar_select 0, %s10, %s8
  // Predicated region
  $region2: #{bert_pretraining_head.1} parent=0 // pred_check
    _
  $region3: #{bert_pretraining_head.1} parent=0 // pred_check_branch
    %13 = sbr.rel (0) target = $region5
  $region4: #{bert_pretraining_head.1} parent=0 // pred_region
    _
  $region5: #{bert_pretraining_head.1} parent=0 // pred_fallthru
    _
  // Predicated region
  $region6: #{bert_pretraining_head.1} parent=0 // pred_check
    _
  $region7: #{bert_pretraining_head.1} parent=0 // pred_check_branch
    %15 = sbr.rel (0) target = $region9
  $region8: #{bert_pretraining_head.1} parent=0 // pred_region
    _
  $region9: #{bert_pretraining_head.1} parent=0 // pred_fallthru
    _
  // Predicated region
  $region10: #{bert_pretraining_head.1} parent=0 // pred_check
    _
  $region11: #{bert_pretraining_head.1} parent=0 // pred_check_branch
    %17 = sbr.rel (0) target = $region13
  $region12: #{bert_pretraining_head.1} parent=0 // pred_region
    _
  $region13: #{bert_pretraining_head.1} parent=0 // pred_fallthru
    _
  // Predicated region
  $region14: #{bert_pretraining_head.1} parent=0 // pred_check
    _
  $region15: #{bert_pretraining_head.1} parent=0 // pred_check_branch
    %19 = sbr.rel (0) target = $region17
  $region16: #{bert_pretraining_head.1} parent=0 // pred_region
    _
  $region17: #{bert_pretraining_head.1} parent=0 // pred_fallthru
    _
  // Predicated region
  $region18: #{bert_pretraining_head.1} parent=0 // pred_check
    _
  $region19: #{bert_pretraining_head.1} parent=0 // pred_check_branch
    %21 = sbr.rel (0) target = $region21
  $region20: #{bert_pretraining_head.1} parent=0 // pred_region
    _
  $region21: #{bert_pretraining_head.1} parent=0 // pred_fallthru
    _
  // Predicated region
  $region22: #{bert_pretraining_head.1} parent=0 // pred_check
    _
  $region23: #{bert_pretraining_head.1} parent=0 // pred_check_branch
    %23 = sbr.rel (0) target = $region25
  $region24: #{bert_pretraining_head.1} parent=0 // pred_region
    _
  $region25: #{bert_pretraining_head.1} parent=0 // pred_fallthru
    _
  // Predicated region
  $region26: #{bert_pretraining_head.1} parent=0 // pred_check
    _
  $region27: #{bert_pretraining_head.1} parent=0 // pred_check_branch
    %25 = sbr.rel (0) target = $region29
  $region28: #{bert_pretraining_head.1} parent=0 // pred_region
    _
  $region29: #{bert_pretraining_head.1} parent=0 // pred_fallthru
    _
  %p27 = scmp.eq.s32.totalorder 0, 0
  // Predicated region
  $region30: #{bert_pretraining_head.1} parent=0 // pred_check
    %p28 = pneg %p27
  $region31: #{bert_pretraining_head.1} parent=0 // pred_check_branch
    %30 = sbr.rel (%p28) target = $region33
  $region32: #{bert_pretraining_head.1} parent=0 // pred_region
    %v31 = vld [vmem:[%s0] sm:$0xf]
    %v32 = vld [vmem:[%s0 + $0x4] sm:$0xf]
    %v33 = vld [vmem:[%s1] sm:$0xf]
    %v34 = vld [vmem:[%s1 + $0x4] sm:$0xf]
    %v35 = vld [vmem:[%s1 + $0x8] sm:$0xf]
    %v36 = vld [vmem:[%s1 + $0xc] sm:$0xf]
    %v37 = vld [vmem:[%s2] sm:$0x1]
    %v39 = vperm.slane %v37, 0
    %v43 = vunpack.c.l.b16 %v31
    %v44 = vunpack.c.l.b16 %v32
    %v45 = vpack.c.b16 %v44, %v43
    %v50 = vunpack.c.l.b16 %v33
    %v51 = vunpack.c.l.b16 %v34
    %v52 = vunpack.c.l.b16 %v35
    %v53 = vunpack.c.l.b16 %v36
    %v54 = vpack.c.b16 %v51, %v50
    %v55 = vpack.c.b16 %v53, %v52
    %vm58 = vcmask 261120
    %v60 = vsel %vm58, %v45, 0
    %62 = vmatpush.bf16.msra.mxu0 0
    %63 = vmatpush.bf16.msra.mxu0 0
    %64 = vmatpush.bf16.msra.mxu0 0
    %65 = vmatpush.bf16.msra.mxu0 0
    %66 = vmatpush.bf16.msra.mxu0 0
    %67 = vmatpush.bf16.msra.mxu0 0
    %68 = vmatpush.bf16.msra.mxu0 %v55
    %69 = vmatpush.bf16.msra.mxu0 %v54
    %70 = vmatmul.bf16.gmra.mxu0 %v60
    %v71 = vpop.f32.mrf.mxu0
    %v72 = vadd.f32 %v39, %v71
    %v73 = vpop.f32.mrf.mxu0
    %v74 = vadd.f32 %v39, %v73
    %75 = vdwg.mxu0
    %v76 = vmul.f32 %v72, 0.5
    %v77 = vmul.f32 %v74, 0.5
    %v78 = vmul.f32 %v72, 0.70710677
    %v79 = vmul.f32 %v74, 0.70710677
    %v80 = vmul.f32 %v78, %v78
    %v81 = vmin.f32 16.0, %v80
    %v82 = vmul.f32 %v81, 2.1237322e-06
    %v83 = vadd.f32 %v82, 0.00028619796
    %v84 = vmul.f32 %v81, %v83
    %v85 = vadd.f32 %v84, 0.0036580483
    %v86 = vmul.f32 %v81, %v85
    %v87 = vadd.f32 %v86, 0.05243302
    %v88 = vmul.f32 %v81, %v87
    %v89 = vadd.f32 %v88, 0.18741608
    %v90 = vmul.f32 %v81, %v89
    %v91 = vadd.f32 %v90, 1.1283791
    %v92 = vmul.f32 %v78, %v91
    %v93 = vmul.f32 %v81, 3.8918573e-05
    %v94 = vadd.f32 %v93, 0.001143296
    %v95 = vmul.f32 %v81, %v94
    %v96 = vadd.f32 %v95, 0.014752088
    %v97 = vmul.f32 %v81, %v96
    %v98 = vadd.f32 %v97, 0.112945676
    %v99 = vmul.f32 %v81, %v98
    %v100 = vadd.f32 %v99, 0.4994258
    %v101 = vmul.f32 %v81, %v100
    %v102 = vadd.f32 %v101, 1.0
    %v103 = vrcp.pop %v102
    %v104 = vmul.f32 %v102, %v103
    %v105 = vsub.f32 1.0, %v104
    %v106 = vmul.f32 %v103, %v105
    %v107 = vadd.f32 %v103, %v106
    %vm108 = vweird.f32 %v102
    %vm109 = vweird.f32 %v103
    %vm110 = vmor %vm108, %vm109
    %v111 = vsel %vm110, %v103, %v107
    %v112 = vand.u32 2147483647, %v102
    %vm113 = vcmp.eq.f32.partialorder %v112, 8.507059e+37
    %v114 = vand.u32 %v102, 2147483648
    %v115 = vor.u32 1.1754944e-38, %v114
    %v116 = vsel %vm113, %v115, %v111
    %v117 = vmul.f32 %v92, %v116
    %v118 = vmin.f32 %v117, 1.0
    %v119 = vmax.f32 %v118, -1.0
    %v120 = vmul.f32 %v79, %v79
    %v121 = vmin.f32 16.0, %v120
    %v122 = vmul.f32 %v121, 2.1237322e-06
    %v123 = vadd.f32 %v122, 0.00028619796
    %v124 = vmul.f32 %v121, %v123
    %v125 = vadd.f32 %v124, 0.0036580483
    %v126 = vmul.f32 %v121, %v125
    %v127 = vadd.f32 %v126, 0.05243302
    %v128 = vmul.f32 %v121, %v127
    %v129 = vadd.f32 %v128, 0.18741608
    %v130 = vmul.f32 %v121, %v129
    %v131 = vadd.f32 %v130, 1.1283791
    %v132 = vmul.f32 %v79, %v131
    %v133 = vmul.f32 %v121, 3.8918573e-05
    %v134 = vadd.f32 %v133, 0.001143296
    %v135 = vmul.f32 %v121, %v134
    %v136 = vadd.f32 %v135, 0.014752088
    %v137 = vmul.f32 %v121, %v136
    %v138 = vadd.f32 %v137, 0.112945676
    %v139 = vmul.f32 %v121, %v138
    %v140 = vadd.f32 %v139, 0.4994258
    %v141 = vmul.f32 %v121, %v140
    %v142 = vadd.f32 %v141, 1.0
    %v143 = vrcp.pop %v142
    %v144 = vmul.f32 %v142, %v143
    %v145 = vsub.f32 1.0, %v144
    %v146 = vmul.f32 %v143, %v145
    %v147 = vadd.f32 %v143, %v146
    %vm148 = vweird.f32 %v142
    %vm149 = vweird.f32 %v143
    %vm150 = vmor %vm148, %vm149
    %v151 = vsel %vm150, %v143, %v147
    %v152 = vand.u32 2147483647, %v142
    %vm153 = vcmp.eq.f32.partialorder %v152, 8.507059e+37
    %v154 = vand.u32 %v142, 2147483648
    %v155 = vor.u32 1.1754944e-38, %v154
    %v156 = vsel %vm153, %v155, %v151
    %v157 = vmul.f32 %v132, %v156
    %v158 = vmin.f32 %v157, 1.0
    %v159 = vmax.f32 %v158, -1.0
    %v160 = vadd.f32 %v119, 1.0
    %v161 = vadd.f32 %v159, 1.0
    %v162 = vmul.f32 %v76, %v160
    %v163 = vmul.f32 %v77, %v161
    %v164 = vsel %vm58, %v162, 0.0
    %165 = vadd.xlane.f32.xlu0 %v164
    %v166 = vpop.xlane.xlu0 %165
    %v167 = vsel %vm58, %v163, 0.0
    %168 = vadd.xlane.f32.xlu0 %v167
    %v169 = vpop.xlane.xlu0 %168
    %v170 = vrcp.pop 32.0
    %v171 = vmul.f32 32.0, %v170
    %v172 = vsub.f32 1.0, %v171
    %v173 = vmul.f32 %v170, %v172
    %v174 = vadd.f32 %v170, %v173
    %vm175 = vweird.f32 %v170
    %v176 = vsel %vm175, %v170, %v174
    %v177 = vmul.f32 %v166, %v176
    %v178 = vmul.f32 %v169, %v176
    %v179 = vsub.f32 %v162, %v177
    %v180 = vsub.f32 %v163, %v178
    %v181 = vmul.f32 %v179, %v179
    %v182 = vmul.f32 %v180, %v180
    %v183 = vsel %vm58, %v181, 0.0
    %184 = vadd.xlane.f32.xlu0 %v183
    %v185 = vpop.xlane.xlu0 %184
    %v186 = vsel %vm58, %v182, 0.0
    %187 = vadd.xlane.f32.xlu0 %v186
    %v188 = vpop.xlane.xlu0 %187
    %v189 = vmul.f32 %v185, %v176
    %v190 = vmul.f32 %v188, %v176
    %v191 = vadd.f32 %v189, 1e-05
    %v192 = vadd.f32 %v190, 1e-05
    %v193 = vrsqrt.pop %v191
    %v194 = vmul.f32 %v193, %v191
    %v195 = vmul.f32 %v194, %v193
    %v196 = vmul.f32 0.5, %v195
    %v197 = vsub.f32 1.5, %v196
    %v198 = vmul.f32 %v193, %v197
    %vm199 = vweird.f32 %v191
    %vm200 = vweird.f32 %v193
    %vm201 = vmor %vm199, %vm200
    %v202 = vsel %vm201, %v193, %v198
    %v203 = vrsqrt.pop %v192
    %v204 = vmul.f32 %v203, %v192
    %v205 = vmul.f32 %v204, %v203
    %v206 = vmul.f32 0.5, %v205
    %v207 = vsub.f32 1.5, %v206
    %v208 = vmul.f32 %v203, %v207
    %vm209 = vweird.f32 %v192
    %vm210 = vweird.f32 %v203
    %vm211 = vmor %vm209, %vm210
    %v212 = vsel %vm211, %v203, %v208
    %v213 = vmul.f32 %v179, %v202
    %v214 = vmul.f32 %v180, %v212
    %v215 = vld [vmem:[%s3] sm:$0x1]
    %v217 = vperm.slane %v215, 0
    %v219 = vmul.f32 %v213, %v217
    %v220 = vmul.f32 %v214, %v217
    %v221 = vld [vmem:[%s4] sm:$0x1]
    %v223 = vperm.slane %v221, 0
    %v225 = vadd.f32 %v219, %v223
    %v226 = vadd.f32 %v220, %v223
    %v227 = vpack.c.bf16 %v225, %v225
    %v228 = vpack.c.bf16 %v226, %v226
    %vm229 = vcmask 257024
    %230 = vst.msk [vmem:[#allocation2] sm:$0xf] %vm229, %v227
    %231 = vst.msk [vmem:[#allocation2 + $0x4] sm:$0xf] %vm229, %v228
  $region33: #{bert_pretraining_head.1} parent=0 // pred_fallthru
    _
  %v232 = vld [vmem:[#allocation2] sm:$0xf]
  %v233 = vld [vmem:[#allocation2 + $0x4] sm:$0xf]
  %v234 = vld [vmem:[%s5] sm:$0xf]
  %v235 = vld [vmem:[%s5 + $0x4] sm:$0xf]
  %v236 = vld [vmem:[%s5 + $0x8] sm:$0xf]
  %v237 = vld [vmem:[%s5 + $0xc] sm:$0xf]
  %v238 = vld [vmem:[%s6] sm:$0x1]
  %v240 = vperm.slane %v238, 0
  %v244 = vunpack.c.l.b16 %v232
  %v245 = vunpack.c.l.b16 %v233
  %v246 = vpack.c.b16 %v245, %v244
  %v251 = vunpack.c.l.b16 %v234
  %v252 = vunpack.c.l.b16 %v235
  %v253 = vunpack.c.l.b16 %v236
  %v254 = vunpack.c.l.b16 %v237
  %v255 = vpack.c.b16 %v252, %v251
  %v256 = vpack.c.b16 %v254, %v253
  %vm259 = vcmask 261120
  %v261 = vsel %vm259, %v246, 0
  %263 = vmatpush.bf16.msra.mxu0 0
  %264 = vmatpush.bf16.msra.mxu0 0
  %265 = vmatpush.bf16.msra.mxu0 0
  %266 = vmatpush.bf16.msra.mxu0 0
  %267 = vmatpush.bf16.msra.mxu0 0
  %268 = vmatpush.bf16.msra.mxu0 0
  %269 = vmatpush.bf16.msra.mxu0 %v256
  %270 = vmatpush.bf16.msra.mxu0 %v255
  %271 = vmatmul.bf16.gmra.mxu0 %v261
  %v272 = vpop.f32.mrf.mxu0
  %v273 = vadd.f32 %v240, %v272
  %v274 = vpop.f32.mrf.mxu0
  %v275 = vadd.f32 %v240, %v274
  %276 = vdwg.mxu0
  %277 = vst [vmem:[%s7] sm:$0xff] %v273
  %278 = vst [vmem:[%s7 + $0x8] sm:$0xff] %v275
  // Predicated region
  $region34: #{bert_pretraining_head.1} parent=0 // pred_check
    _
  $region35: #{bert_pretraining_head.1} parent=0 // pred_check_branch
    %280 = sbr.rel (0) target = $region37
  $region36: #{bert_pretraining_head.1} parent=0 // pred_region
    _
  $region37: #{bert_pretraining_head.1} parent=0 // pred_fallthru
    _
  // Predicated region
  $region38: #{bert_pretraining_head.1} parent=0 // pred_check
    _
  $region39: #{bert_pretraining_head.1} parent=0 // pred_check_branch
    %282 = sbr.rel (0) target = $region41
  $region40: #{bert_pretraining_head.1} parent=0 // pred_region
    _
  $region41: #{bert_pretraining_head.1} parent=0 // pred_fallthru
    _

</llo_original>
